<compile_context>
chip_gen: v6e
topology: v6e:2x2x1
jax: 0.10.0
libtpu: 0.0.40
codegen_flags: <defaults>
</compile_context>

<pallas_src>
import math

import jax
import jax.numpy as jnp
import numpy as np
from jax.experimental import pallas as pl
from jax.experimental.pallas import tpu as pltpu


def _uncertainty_kernel(loss_ref, logvar_ref, prec_ref, total_ref):
    """loss_ref:   (1, N) f32 VMEM  -- task losses (unpadded)
       logvar_ref: (1, N) f32 VMEM  -- learned log variances (unpadded)
       prec_ref:   (1, N) f32 VMEM  -- output: precision = exp(-log_var)
       total_ref:  (1, 1) f32 SMEM  -- output: scalar total loss"""
    losses = loss_ref[...]                       # (1, N)
    log_vars = logvar_ref[...]                   # (1, N)

    precision = jnp.exp(-log_vars)               # EUP transcendental
    prec_ref[...] = precision                    # lane-contiguous VMEM store

    weighted = precision * losses + log_vars     # VPU elementwise
    total_ref[0, 0] = jnp.sum(weighted)          # reduce -> scalar, SMEM store


def _uncertainty_forward(loss_values, log_vars):
    """loss_values: f32[num_tasks], log_vars: f32[num_tasks].
       Returns (total_loss scalar f32, precision f32[num_tasks])."""
    n = loss_values.shape[0]
    losses_2d = loss_values.astype(jnp.float32).reshape(1, n)
    log_vars_2d = log_vars.astype(jnp.float32).reshape(1, n)

    prec_out, total_out = pl.pallas_call(
        _uncertainty_kernel,
        out_shape=(
            jax.ShapeDtypeStruct((1, n), jnp.float32),   # precision
            jax.ShapeDtypeStruct((1, 1), jnp.float32),   # scalar total
        ),
        in_specs=[
            pl.BlockSpec(memory_space=pltpu.MemorySpace.VMEM),
            pl.BlockSpec(memory_space=pltpu.MemorySpace.VMEM),
        ],
        out_specs=(
            pl.BlockSpec(memory_space=pltpu.MemorySpace.VMEM),
            pl.BlockSpec(memory_space=pltpu.MemorySpace.SMEM),
        ),
        # Tell XLA this custom call is essentially free.
        cost_estimate=pl.CostEstimate(
            flops=3 * n, transcendentals=n, bytes_accessed=4 * (3 * n + 1)),
    )(losses_2d, log_vars_2d)

    return total_out[0, 0], prec_out[0, :]


# ----- analytic gradients so log_vars / losses are trainable through the kernel -----
@jax.custom_vjp
def uncertainty_loss_pallas(loss_values, log_vars):
    return _uncertainty_forward(loss_values, log_vars)


def _uncertainty_fwd(loss_values, log_vars):
    total, precision = _uncertainty_forward(loss_values, log_vars)
    return (total, precision), (loss_values, precision)


def _uncertainty_bwd(residuals, cotangents):
    loss_values, precision = residuals
    g_total, g_prec = cotangents
    # total = sum_i(exp(-lv_i)*loss_i + lv_i);  prec_i = exp(-lv_i)
    d_loss = g_total * precision
    d_log_var = g_total * (1.0 - precision * loss_values) - g_prec * precision
    return d_loss, d_log_var


uncertainty_loss_pallas.defvjp(_uncertainty_fwd, _uncertainty_bwd)


@jax.jit
def _uncertainty_jit(loss_values, log_vars):
    return uncertainty_loss_pallas(loss_values, log_vars)


class UncertaintyLossJax:
    """Thin wrapper mirroring the PyTorch module's interface."""

    def __init__(self, num_tasks: int = 2, init_weight: float = 1.0):
        self.num_tasks = num_tasks
        # nn.Parameter(torch.ones(num_tasks) * np.log(init_weight))
        self.log_vars = jnp.ones((num_tasks,), jnp.float32) * math.log(init_weight)

    def __call__(self, losses: dict, sync_weights: bool = False):
        names = list(losses.keys())
        loss_vec = jnp.stack([jnp.asarray(v, jnp.float32).reshape(())
                              for v in losses.values()])
        total, precision = _uncertainty_jit(loss_vec, self.log_vars)

        weights = {}
        if sync_weights:
            # One batched device->host transfer, only when explicitly requested
            # (e.g. logging cadence) -- avoids a per-step host sync.
            prec_host, log_vars_host = jax.device_get((precision, self.log_vars))
            prec_host = np.asarray(prec_host)
            log_vars_host = np.asarray(log_vars_host)
            for i, name in enumerate(names):
                weights[f"{name}_weight"] = float(prec_host[i])
                weights[f"{name}_log_var"] = float(log_vars_host[i])
        else:
            # Lazy device scalars; no host blocking in the training step.
            for i, name in enumerate(names):
                weights[f"{name}_weight"] = precision[i]
                weights[f"{name}_log_var"] = self.log_vars[i]
        return total, weights


if __name__ == "__main__":
    key = jax.random.PRNGKey(0)
    k1, k2, k3 = jax.random.split(key, 3)

    # Two synthetic scalar task losses (e.g. detection + re-id heads).
    det_loss = jnp.abs(jax.random.normal(k1, ())) + 0.5
    id_loss = jnp.abs(jax.random.normal(k2, ())) + 0.5
    losses = {"det": det_loss, "id": id_loss}

    module = UncertaintyLossJax(num_tasks=2, init_weight=1.0)
    total_loss, weights = module(losses, sync_weights=True)
    total_loss = jax.block_until_ready(total_loss)

    # Pure-JAX reference check (forward).
    lv = module.log_vars
    stacked = jnp.stack([det_loss, id_loss])
    ref_total = jnp.sum(jnp.exp(-lv) * stacked + lv)
    assert jnp.allclose(total_loss, ref_total, rtol=1e-5, atol=1e-5), (total_loss, ref_total)

    ref_w = jax.device_get(jnp.exp(-lv))
    assert abs(weights["det_weight"] - float(ref_w[0])) < 1e-5
    assert abs(weights["id_weight"] - float(ref_w[1])) < 1e-5

    # Gradient path check through the custom_vjp (log_vars trainable).
    def scalar_total(lv_param):
        t, _ = _uncertainty_jit(stacked, lv_param)
        return t

    g = jax.block_until_ready(jax.grad(scalar_total)(lv))
    g_ref = 1.0 - jnp.exp(-lv) * stacked
    assert jnp.allclose(g, g_ref, rtol=1e-5, atol=1e-5), (g, g_ref)

    # Larger task count: no padding assumptions left, works for any small N.
    n = 5
    lv5 = jax.random.normal(k3, (n,), jnp.float32) * 0.1
    losses5 = jnp.abs(jax.random.normal(k3, (n,), jnp.float32)) + 0.1
    t5, p5 = _uncertainty_jit(losses5, lv5)
    ref_t5 = jnp.sum(jnp.exp(-lv5) * losses5 + lv5)
    assert jnp.allclose(jax.block_until_ready(t5), ref_t5, rtol=1e-5, atol=1e-5)
    assert jnp.allclose(p5, jnp.exp(-lv5), rtol=1e-5, atol=1e-5)

    print("KERNEL_OK")
</pallas_src>

<mosaic_0001>
module attributes {stable_mosaic.version = 11 : i64} {
  func.func @_uncertainty_kernel(%arg0: memref<1x2xf32, #tpu.memory_space<vmem>>, %arg1: memref<1x2xf32, #tpu.memory_space<vmem>>, %arg2: memref<1x2xf32, #tpu.memory_space<vmem>>, %arg3: memref<1x1xf32, #tpu.memory_space<smem>>) attributes {dimension_semantics = [], scalar_prefetch = 0 : i64, scratch_operands = 0 : i64, tpu.core_type = #tpu.core_type<tc>} {
    %c0 = arith.constant 0 : index
    %c0_0 = arith.constant 0 : index
    %0 = vector.load %arg0[%c0, %c0_0] : memref<1x2xf32, #tpu.memory_space<vmem>>, vector<1x2xf32>
    %c0_1 = arith.constant 0 : index
    %c0_2 = arith.constant 0 : index
    %1 = vector.load %arg1[%c0_1, %c0_2] : memref<1x2xf32, #tpu.memory_space<vmem>>, vector<1x2xf32>
    %cst = arith.constant 0.000000e+00 : f32
    %2 = vector.broadcast %cst : f32 to vector<1x2xf32>
    %3 = arith.subf %2, %1 : vector<1x2xf32>
    %4 = math.exp %3 : vector<1x2xf32>
    %c0_3 = arith.constant 0 : index
    %c0_4 = arith.constant 0 : index
    %5 = vector.load %arg2[%c0_3, %c0_4] : memref<1x2xf32, #tpu.memory_space<vmem>>, vector<1x2xf32>
    tpu.vector_store %arg2[%c0_3, %c0_4], %4 {strides = array<i32>} : memref<1x2xf32, #tpu.memory_space<vmem>>, vector<1x2xf32>,
    %6 = arith.mulf %4, %0 : vector<1x2xf32>
    %7 = arith.addf %6, %1 : vector<1x2xf32>
    %8 = vector.shape_cast %7 : vector<1x2xf32> to vector<1x1x2xf32>
    %cst_5 = arith.constant dense<0.000000e+00> : vector<1xf32>
    %9 = vector.multi_reduction <add>, %8, %cst_5 [1, 2] : vector<1x1x2xf32> to vector<1xf32>
    %10 = vector.shape_cast %9 : vector<1xf32> to vector<1x1x1xf32>
    %11 = vector.extract %10[0, 0, 0] : f32 from vector<1x1x1xf32>
    %c0_6 = arith.constant 0 : index
    %c0_7 = arith.constant 0 : index
    %12 = memref.load %arg3[%c0_6, %c0_7] : memref<1x1xf32, #tpu.memory_space<smem>>
    memref.store %11, %arg3[%c0_6, %c0_7] : memref<1x1xf32, #tpu.memory_space<smem>>
    return
  }
}

</mosaic_0001>

<llo_original>
// kernel: _uncertainty_jit.1
$region0: #{_uncertainty_jit.1}
  #allocation0 [shape = 'u32[]', space=smem, size = 0x4, offset = 0x4, fixed_abs, tag = 'smem constant byte address 0x4 - core index']
  #allocation1 [shape = 'u32[144,128]{1,0:T(1,128)}', space=vmem, size = 0x12000, scoped, tag = 'internal scratch']
  %s0 = inlined_call_operand.vmem [shape: f32[1,2], index: 0, kind: input, shape index: {}]
  %s1 = inlined_call_operand.vmem [shape: f32[1,2], index: 1, kind: input, shape index: {}]
  %s2 = inlined_call_operand.hbm [shape: f32[1,2], index: 2, kind: output, shape index: {0}]
  %s3 = inlined_call_operand.hbm [shape: f32[1,1], index: 3, kind: output, shape index: {1}]
  %4 = xla_tuple %s2, %s3
  %s5 = sld [smem:[#allocation0]]
  $region26: #{_uncertainty_jit.1} parent=0
    _
  %s7 = ssub.s32 1, %s5
  %s8 = scalar_select 0, %s7, %s5
  $region1: #{_uncertainty_jit.1} parent=0
    #allocation2 [shape = 'u8[512]{0}', space=vmem, size = 0x400, scoped, tag = 'output window, operand 0, single buffered']
    #allocation3 [shape = 's32[1]{0}', space=sflag, size = 0x4, scoped, tag = 'scoped memory for _uncertainty_jit.1']
    #allocation4 [shape = 's32[1]{0}', space=sflag, size = 0x4, scoped, tag = 'scoped memory for _uncertainty_jit.1']
    #allocation5 [shape = 'u8[512]{0}', space=smem, size = 0x200, scoped, tag = 'output window, operand 1, single buffered']
    %9 = vsyncpa [#allocation3], 0
    %10 = vsyncpa [#allocation4], 0
    // Predicated region
    $region2: #{_uncertainty_jit.1} parent=1 // pred_check
      _
    $region3: #{_uncertainty_jit.1} parent=1 // pred_check_branch
      %12 = sbr.rel (0) target = $region5
    $region4: #{_uncertainty_jit.1} parent=1 // pred_region
      _
    $region5: #{_uncertainty_jit.1} parent=1 // pred_fallthru
      _
    // Predicated region
    $region6: #{_uncertainty_jit.1} parent=1 // pred_check
      _
    $region7: #{_uncertainty_jit.1} parent=1 // pred_check_branch
      %14 = sbr.rel (0) target = $region9
    $region8: #{_uncertainty_jit.1} parent=1 // pred_region
      _
    $region9: #{_uncertainty_jit.1} parent=1 // pred_fallthru
      _
    %v15 = vld [vmem:[%s0] sm:$0x1]
    %v16 = vld [vmem:[%s1] sm:$0x1]
    %v17 = vsub.f32 0.0, %v16
    %v18 = vmul.f32 %v17, 1.442695
    %v19 = vpow.pop %v18
    %vm20 = vcmask 8192
    %21 = vst.msk [vmem:[#allocation2] sm:$0x1] %vm20, %v19
    %v22 = vmul.f32 %v19, %v15
    %v23 = vadd.f32 %v22, %v16
    %v24 = vsel %vm20, %v23, 0.0
    %25 = vadd.xlane.f32.xlu0 %v24
    %v26 = vpop.xlane.xlu0 %25
    %v27 = vrot.slane %v26, 4
    %v28 = vadd.f32 %v26, %v27
    %v29 = vrot.slane %v28, 2
    %v30 = vadd.f32 %v28, %v29
    %v31 = vrot.slane %v30, 1
    %v32 = vadd.f32 %v30, %v31
    %s33 = vtos %v32
    %s34 = scalar_lea.smem [#allocation5], 0
    %35 = sst [smem:[%s34]] %s33
    // Predicated region
    $region10: #{_uncertainty_jit.1} parent=1 // pred_check
      _
    $region11: #{_uncertainty_jit.1} parent=1 // pred_check_branch
      %37 = sbr.rel (0) target = $region13
    $region12: #{_uncertainty_jit.1} parent=1 // pred_region
      %s39 = ssub.s32 16, 16
      %40 = vsyncadd [#allocation3], %s39
      %s42 = sshll.u32 [#allocation2], 4
      %s43 = int_to_ptr.vmem [resolvable:$true] %s42
      %45 = dma.vmem_to_hbm [thread:$0]  %s43, 16, %s2, [#allocation3]
    $region13: #{_uncertainty_jit.1} parent=1 // pred_fallthru
      _
    // Predicated region
    $region14: #{_uncertainty_jit.1} parent=1 // pred_check
      _
    $region15: #{_uncertainty_jit.1} parent=1 // pred_check_branch
      %47 = sbr.rel (0) target = $region17
    $region16: #{_uncertainty_jit.1} parent=1 // pred_region
      %s49 = ssub.s32 16, 16
      %50 = vsyncadd [#allocation4], %s49
      %53 = dma.smem_to_hbm [#allocation5], 16, %s3, [#allocation4]
    $region17: #{_uncertainty_jit.1} parent=1 // pred_fallthru
      _
    // Predicated region
    $region18: #{_uncertainty_jit.1} parent=1 // pred_check
      _
    $region19: #{_uncertainty_jit.1} parent=1 // pred_check_branch
      %55 = sbr.rel (0) target = $region21
    $region20: #{_uncertainty_jit.1} parent=1 // pred_region
      %56 = dma.done [#allocation3], 16
    $region21: #{_uncertainty_jit.1} parent=1 // pred_fallthru
      _
    // Predicated region
    $region22: #{_uncertainty_jit.1} parent=1 // pred_check
      _
    $region23: #{_uncertainty_jit.1} parent=1 // pred_check_branch
      %58 = sbr.rel (0) target = $region25
    $region24: #{_uncertainty_jit.1} parent=1 // pred_region
      %59 = dma.done [#allocation4], 16
    $region25: #{_uncertainty_jit.1} parent=1 // pred_fallthru
      _
    %60 = sfence
    %61 = vsyncpa [#allocation3], 1
    %62 = vsyncpa [#allocation4], 1

</llo_original>
